<compile_context>
chip_gen: v6e
topology: v6e:2x2x1
jax: 0.10.0
libtpu: 0.0.40
codegen_flags: <defaults>
</compile_context>

<pallas_src>
import functools

import jax
import jax.numpy as jnp
from jax.experimental import pallas as pl
from jax.experimental.pallas import tpu as pltpu

LN_EPS = 1e-5  # PyTorch nn.LayerNorm default eps
_MIB = 1024 * 1024


def _round_up(n, m):
    return ((n + m - 1) // m) * m


def _layer_norm(h, gamma, beta, n_valid, n_padded):
    """LayerNorm over the last dim; statistics over the first n_valid lanes only.

    gamma/beta are zero in padded lanes, so padded output lanes come out exactly 0.
    """
    if n_valid == n_padded:
        mu = jnp.mean(h, axis=-1, keepdims=True)
        var = jnp.mean((h - mu) ** 2, axis=-1, keepdims=True)
    else:
        inv_n = 1.0 / n_valid
        mask = jax.lax.broadcasted_iota(jnp.int32, h.shape, h.ndim - 1) < n_valid
        hm = jnp.where(mask, h, 0.0)
        mu = jnp.sum(hm, axis=-1, keepdims=True) * inv_n
        d = jnp.where(mask, h - mu, 0.0)
        var = jnp.sum(d * d, axis=-1, keepdims=True) * inv_n
    return (h - mu) * jax.lax.rsqrt(var + LN_EPS) * gamma + beta


def mlp_model_kernel(x_ref, w1_ref, b1_ref, g1_ref, be1_ref,
                     w2_ref, b2_ref, g2_ref, be2_ref,
                     w3_ref, b3_ref, o_ref, h_ref,
                     *, hidden, hidden_pad):
    # Layers 1-2 depend only on the batch tile -> compute once per batch tile and
    # cache in VMEM.  Correct ONLY because grid axis 1 (nb_gos) is the innermost
    # sequential ("arbitrary") axis; do NOT mark it parallel/core_parallel.
    @pl.when(pl.program_id(1) == 0)
    def _():
        x = x_ref[...]                                        # bf16 (tm, Dp)
        h = jnp.dot(x, w1_ref[...], preferred_element_type=jnp.float32)
        h = jnp.maximum(h + b1_ref[...], 0.0)
        h = _layer_norm(h, g1_ref[...], be1_ref[...], hidden, hidden_pad)

        r = jnp.dot(h.astype(jnp.bfloat16), w2_ref[...],
                    preferred_element_type=jnp.float32)
        r = jnp.maximum(r + b2_ref[...], 0.0)
        r = _layer_norm(r, g2_ref[...], be2_ref[...], hidden, hidden_pad)

        h_ref[...] = (h + r).astype(h_ref.dtype)              # residual, cached bf16

    # Final linear + sigmoid on the current (batch, nb_gos) tile.
    logits = jnp.dot(h_ref[...], w3_ref[...],
                     preferred_element_type=jnp.float32) + b3_ref[...]
    # sigmoid(z) = 0.5 * tanh(z/2) + 0.5 -> a single EUP transcendental (exact).
    o_ref[...] = (0.5 * jnp.tanh(0.5 * logits) + 0.5).astype(o_ref.dtype)


def _vmem_capacity_bytes():
    try:
        return int(pltpu.get_tpu_info().vmem_capacity_bytes)
    except Exception:
        return 64 * _MIB  # conservative fallback: v7x has 64 MiB per TensorCore


def _vmem_bytes(tm, tn, Dp, Hp, Np, w3_resident):
    """Estimated kernel VMEM footprint (residents single-buffered via Buffered(1))."""
    bf16, f32 = 2, 4
    resident = Dp * Hp * bf16 + Hp * Hp * bf16 + 8 * Hp * f32   # w1, w2, vec params
    x_tile = 2 * tm * Dp * bf16                                 # double-buffered
    out_tile = 2 * tm * tn * bf16                               # bf16 writeback
    h_scr = tm * Hp * bf16
    if w3_resident:
        w3 = Hp * Np * bf16 + Np * f32                          # single-buffered
    else:
        w3 = 2 * (Hp * tn * bf16 + tn * f32)                    # streamed, 2-deep
    return resident + x_tile + out_tile + h_scr + w3


def prepare_model(params, *, block_m=512, block_n=1024, w3_resident=None,
                  vmem_budget_bytes=None):
    """One-time weight padding/casting + per-generation tiling / VMEM budget.

    Hoisted out of the per-call forward so weight pad/convert HBM traffic is
    paid once for a fixed model, not on every forward.
    """
    D, H = params["w1"].shape
    N = params["w3"].shape[1]

    Dp, Hp = _round_up(D, 128), _round_up(H, 128)
    Np128 = _round_up(N, 128)

    if vmem_budget_bytes is None:
        vmem_budget_bytes = int(_vmem_capacity_bytes() * 0.75)

    tm_cap = _round_up(block_m, 8)

    # Resident w3 removes the per-batch-tile w3 re-stream (biggest HBM saving on
    # v5e/v6e's 128 MiB VMEM; on v7x only when nb_gos is modest).
    if w3_resident is None:
        w3_resident = _vmem_bytes(tm_cap, Np128, Dp, Hp, Np128, True) <= vmem_budget_bytes

    if w3_resident:
        tn = Np128
    else:
        tn = min(Np128, _round_up(block_n, 128))
        while tn > 128 and _vmem_bytes(tm_cap, tn, Dp, Hp, Np128, False) > vmem_budget_bytes:
            tn -= 128
    Np = _round_up(N, tn)

    # If still over budget, shrink the batch-tile cap.
    while tm_cap > 8 and _vmem_bytes(tm_cap, tn, Dp, Hp, Np, w3_resident) > vmem_budget_bytes:
        tm_cap = max(8, _round_up(tm_cap // 2, 8))

    est = _vmem_bytes(tm_cap, tn, Dp, Hp, Np, w3_resident)
    vmem_limit = int(min(max(est + 8 * _MIB, 32 * _MIB), _vmem_capacity_bytes()))

    f32, bf16 = jnp.float32, jnp.bfloat16

    def pad2(a, rows, cols, dtype):
        return jnp.pad(a, ((0, rows - a.shape[0]),
                           (0, cols - a.shape[1]))).astype(dtype)

    return {
        "D": D, "H": H, "N": N, "Dp": Dp, "Hp": Hp, "Np": Np,
        "tn": tn, "tm_cap": tm_cap, "w3_resident": bool(w3_resident),
        "vmem_limit_bytes": vmem_limit,
        # Matmul operands bf16 (halves weight DMA, native MXU rate); vector params f32.
        "w1": pad2(params["w1"], Dp, Hp, bf16),
        "b1": pad2(params["b1"], 1, Hp, f32),
        "g1": pad2(params["g1"], 1, Hp, f32),
        "be1": pad2(params["be1"], 1, Hp, f32),
        "w2": pad2(params["w2"], Hp, Hp, bf16),
        "b2": pad2(params["b2"], 1, Hp, f32),
        "g2": pad2(params["g2"], 1, Hp, f32),
        "be2": pad2(params["be2"], 1, Hp, f32),
        "w3": pad2(params["w3"], Hp, Np, bf16),
        "b3": pad2(params["b3"], 1, Np, f32),
    }


def mlp_model_forward(x, model):
    """Fused MLPModel forward on pre-padded params from prepare_model()."""
    B, D = x.shape
    assert D == model["D"]
    Dp, Hp, Np, tn, H = model["Dp"], model["Hp"], model["Np"], model["tn"], model["H"]

    tm = min(_round_up(B, 8), model["tm_cap"])
    # When w3 is resident, splitting the batch into >= 2 tiles costs no extra HBM
    # traffic and lets v7x's second TensorCore work the "parallel" axis.
    if model["w3_resident"] and B > 8 and _round_up(B, tm) // tm < 2:
        tm = _round_up((B + 1) // 2, 8)
    Mp = _round_up(B, tm)

    xp = jnp.pad(x, ((0, Mp - B), (0, Dp - D))).astype(jnp.bfloat16)

    grid = (Mp // tm, Np // tn)
    kernel = functools.partial(mlp_model_kernel, hidden=H, hidden_pad=Hp)

    const = lambda i, j: (0, 0)
    resident = dict(pipeline_mode=pl.Buffered(1))   # never re-fetched -> single buffer

    in_specs = [
        pl.BlockSpec((tm, Dp), lambda i, j: (i, 0)),          # x   : batch tile
        pl.BlockSpec((Dp, Hp), const, **resident),            # w1  : resident
        pl.BlockSpec((1, Hp), const, **resident),             # b1
        pl.BlockSpec((1, Hp), const, **resident),             # g1
        pl.BlockSpec((1, Hp), const, **resident),             # be1
        pl.BlockSpec((Hp, Hp), const, **resident),            # w2  : resident
        pl.BlockSpec((1, Hp), const, **resident),             # b2
        pl.BlockSpec((1, Hp), const, **resident),             # g2
        pl.BlockSpec((1, Hp), const, **resident),             # be2
    ]
    if model["w3_resident"]:
        in_specs += [pl.BlockSpec((Hp, tn), const, **resident),     # w3 : resident
                     pl.BlockSpec((1, tn), const, **resident)]      # b3 : resident
    else:
        in_specs += [pl.BlockSpec((Hp, tn), lambda i, j: (0, j)),   # w3 : streamed
                     pl.BlockSpec((1, tn), lambda i, j: (0, j))]    # b3 : streamed

    out = pl.pallas_call(
        kernel,
        out_shape=jax.ShapeDtypeStruct((Mp, Np), jnp.bfloat16),     # bf16 writeback
        grid=grid,
        in_specs=in_specs,
        out_specs=pl.BlockSpec((tm, tn), lambda i, j: (i, j)),
        scratch_shapes=[pltpu.VMEM((tm, Hp), jnp.bfloat16)],        # cached hidden
        compiler_params=pltpu.CompilerParams(
            dimension_semantics=("parallel", "arbitrary"),
            vmem_limit_bytes=model["vmem_limit_bytes"]),
    )(xp, model["w1"], model["b1"], model["g1"], model["be1"],
      model["w2"], model["b2"], model["g2"], model["be2"],
      model["w3"], model["b3"])

    return out[:B, :model["N"]]


def init_params(key, input_length, hidden, nb_gos):
    """Deterministic synthetic parameter init (shapes match the PyTorch module)."""
    k1, k2, k3 = jax.random.split(key, 3)
    return {
        # MLPBlock(input_length, hidden)
        "w1": jax.random.normal(k1, (input_length, hidden), jnp.float32) * 0.1,
        "b1": jnp.full((1, hidden), 0.01, jnp.float32),
        "g1": jnp.ones((1, hidden), jnp.float32),    # LayerNorm weight
        "be1": jnp.zeros((1, hidden), jnp.float32),  # LayerNorm bias
        # Residual(MLPBlock(hidden, hidden))
        "w2": jax.random.normal(k2, (hidden, hidden), jnp.float32) * 0.1,
        "b2": jnp.full((1, hidden), -0.01, jnp.float32),
        "g2": jnp.ones((1, hidden), jnp.float32),
        "be2": jnp.zeros((1, hidden), jnp.float32),
        # Linear(hidden, nb_gos)
        "w3": jax.random.normal(k3, (hidden, nb_gos), jnp.float32) * 0.1,
        "b3": jnp.zeros((1, nb_gos), jnp.float32),
    }


def reference_forward(x, p):
    """Pure-JAX f32 reference of the same forward (for correctness check)."""
    def ln(h, g, b):
        mu = jnp.mean(h, axis=-1, keepdims=True)
        var = jnp.mean((h - mu) ** 2, axis=-1, keepdims=True)
        return (h - mu) * jax.lax.rsqrt(var + LN_EPS) * g + b

    h = jnp.maximum(x @ p["w1"] + p["b1"], 0.0)
    h = ln(h, p["g1"], p["be1"])
    r = jnp.maximum(h @ p["w2"] + p["b2"], 0.0)
    r = ln(r, p["g2"], p["be2"])
    h = h + r
    return jax.nn.sigmoid(h @ p["w3"] + p["b3"])


if __name__ == "__main__":
    # Small shapes consistent with MLPModel(input_length=40, nb_gos=300, nodes=[96]);
    # dims deliberately NOT 128-aligned to exercise the padded/masked paths.
    B, INPUT_LENGTH, HIDDEN, NB_GOS = 24, 40, 96, 300

    key = jax.random.PRNGKey(0)
    kx, kp = jax.random.split(key)
    x = jax.random.normal(kx, (B, INPUT_LENGTH), jnp.float32)
    params = init_params(kp, INPUT_LENGTH, HIDDEN, NB_GOS)

    ref = reference_forward(x, params)

    # Path 1: auto config -> w3 resident (fits trivially), batch split into 2 tiles
    # so the "parallel" grid axis actually has >= 2 programs.
    model_res = prepare_model(params)
    out_res = jax.block_until_ready(mlp_model_forward(x, model_res))

    # Path 2: force the streamed-w3 path with small tiles -> a real (3, 3) grid,
    # exercising the pl.when hidden-cache reuse across nb_gos tiles.
    model_str = prepare_model(params, block_m=8, block_n=128, w3_resident=False)
    out_str = jax.block_until_ready(mlp_model_forward(x, model_str))

    for out in (out_res, out_str):
        assert out.shape == (B, NB_GOS)
        # bf16 matmul operands + bf16 output vs pure-f32 reference -> relaxed tol.
        assert jnp.allclose(out.astype(jnp.float32), ref, atol=2.5e-2, rtol=2.5e-2), \
            "Pallas kernel mismatch vs reference"

    print("KERNEL_OK")
</pallas_src>

<mosaic_0001>
module attributes {stable_mosaic.version = 11 : i64} {
  func.func @mlp_model_kernel(%arg0: i32, %arg1: i32, %arg2: memref<16x128xbf16, #tpu.memory_space<vmem>>, %arg3: memref<128x128xbf16, #tpu.memory_space<vmem>>, %arg4: memref<1x128xf32, #tpu.memory_space<vmem>>, %arg5: memref<1x128xf32, #tpu.memory_space<vmem>>, %arg6: memref<1x128xf32, #tpu.memory_space<vmem>>, %arg7: memref<128x128xbf16, #tpu.memory_space<vmem>>, %arg8: memref<1x128xf32, #tpu.memory_space<vmem>>, %arg9: memref<1x128xf32, #tpu.memory_space<vmem>>, %arg10: memref<1x128xf32, #tpu.memory_space<vmem>>, %arg11: memref<128x384xbf16, #tpu.memory_space<vmem>>, %arg12: memref<1x384xf32, #tpu.memory_space<vmem>>, %arg13: memref<16x384xbf16, #tpu.memory_space<vmem>>, %arg14: memref<16x128xbf16, #tpu.memory_space<vmem>>) attributes {dimension_semantics = [#tpu.dimension_semantics<parallel>, #tpu.dimension_semantics<arbitrary>], iteration_bounds = array<i64: 2, 1>, scalar_prefetch = 0 : i64, scratch_operands = 1 : i64, tpu.core_type = #tpu.core_type<tc>, window_params = [{transform_indices = @transform_0, window_bounds = array<i64: 16, 128>}, {pipeline_mode = #tpu.pipeline_mode<synchronous>, transform_indices = @transform_1, window_bounds = array<i64: 128, 128>}, {pipeline_mode = #tpu.pipeline_mode<synchronous>, transform_indices = @transform_2, window_bounds = array<i64: 1, 128>}, {pipeline_mode = #tpu.pipeline_mode<synchronous>, transform_indices = @transform_3, window_bounds = array<i64: 1, 128>}, {pipeline_mode = #tpu.pipeline_mode<synchronous>, transform_indices = @transform_4, window_bounds = array<i64: 1, 128>}, {pipeline_mode = #tpu.pipeline_mode<synchronous>, transform_indices = @transform_5, window_bounds = array<i64: 128, 128>}, {pipeline_mode = #tpu.pipeline_mode<synchronous>, transform_indices = @transform_6, window_bounds = array<i64: 1, 128>}, {pipeline_mode = #tpu.pipeline_mode<synchronous>, transform_indices = @transform_7, window_bounds = array<i64: 1, 128>}, {pipeline_mode = #tpu.pipeline_mode<synchronous>, transform_indices = @transform_8, window_bounds = array<i64: 1, 128>}, {pipeline_mode = #tpu.pipeline_mode<synchronous>, transform_indices = @transform_9, window_bounds = array<i64: 128, 384>}, {pipeline_mode = #tpu.pipeline_mode<synchronous>, transform_indices = @transform_10, window_bounds = array<i64: 1, 384>}, {transform_indices = @transform_11, window_bounds = array<i64: 16, 384>}]} {
    %c0_i32 = arith.constant 0 : i32
    %0 = arith.cmpi eq, %arg1, %c0_i32 : i32
    %1 = arith.extui %0 : i1 to i32
    %c0_i32_0 = arith.constant 0 : i32
    %2 = arith.cmpi ne, %1, %c0_i32_0 : i32
    scf.if %2 {
      %c0_11 = arith.constant 0 : index
      %c0_12 = arith.constant 0 : index
      %18 = vector.load %arg2[%c0_11, %c0_12] : memref<16x128xbf16, #tpu.memory_space<vmem>>, vector<16x128xbf16>
      %c0_13 = arith.constant 0 : index
      %c0_14 = arith.constant 0 : index
      %19 = vector.load %arg3[%c0_13, %c0_14] : memref<128x128xbf16, #tpu.memory_space<vmem>>, vector<128x128xbf16>
      %cst_15 = arith.constant dense<0.000000e+00> : vector<16x128xf32>
      %20 = tpu.matmul %18, %19, %cst_15 {dimension_numbers = #tpu.dot_dimension_numbers<[1], [0], [0], [1], [0, 0, 1, 1], [], []>} : vector<16x128xbf16>, vector<128x128xbf16>, vector<16x128xf32> -> vector<16x128xf32>
      %c0_16 = arith.constant 0 : index
      %c0_17 = arith.constant 0 : index
      %21 = vector.load %arg4[%c0_16, %c0_17] : memref<1x128xf32, #tpu.memory_space<vmem>>, vector<1x128xf32>
      %22 = vector.broadcast %21 : vector<1x128xf32> to vector<16x128xf32>
      %23 = arith.addf %20, %22 : vector<16x128xf32>
      %cst_18 = arith.constant 0.000000e+00 : f32
      %24 = vector.broadcast %cst_18 : f32 to vector<16x128xf32>
      %25 = arith.maximumf %23, %24 : vector<16x128xf32>
      %c0_19 = arith.constant 0 : index
      %c0_20 = arith.constant 0 : index
      %26 = vector.load %arg5[%c0_19, %c0_20] : memref<1x128xf32, #tpu.memory_space<vmem>>, vector<1x128xf32>
      %c0_21 = arith.constant 0 : index
      %c0_22 = arith.constant 0 : index
      %27 = vector.load %arg6[%c0_21, %c0_22] : memref<1x128xf32, #tpu.memory_space<vmem>>, vector<1x128xf32>
      %28 = tpu.iota {dimensions = array<i32: 1>} : vector<16x128xi32>
      %c96_i32 = arith.constant 96 : i32
      %29 = vector.broadcast %c96_i32 : i32 to vector<16x128xi32>
      %30 = arith.cmpi slt, %28, %29 : vector<16x128xi32>
      %cst_23 = arith.constant 0.000000e+00 : f32
      %31 = vector.broadcast %cst_23 : f32 to vector<16x128xf32>
      %32 = arith.select %30, %25, %31 : vector<16x128xi1>, vector<16x128xf32>
      %cst_24 = arith.constant dense<0.000000e+00> : vector<16xf32>
      %33 = vector.multi_reduction <add>, %32, %cst_24 [1] : vector<16x128xf32> to vector<16xf32>
      %34 = vector.shape_cast %33 : vector<16xf32> to vector<16x1xf32>
      %cst_25 = arith.constant 0.010416667 : f32
      %35 = vector.broadcast %cst_25 : f32 to vector<16x1xf32>
      %36 = arith.mulf %34, %35 : vector<16x1xf32>
      %37 = vector.broadcast %36 : vector<16x1xf32> to vector<16x128xf32>
      %38 = arith.subf %25, %37 : vector<16x128xf32>
      %cst_26 = arith.constant 0.000000e+00 : f32
      %39 = vector.broadcast %cst_26 : f32 to vector<16x128xf32>
      %40 = arith.select %30, %38, %39 : vector<16x128xi1>, vector<16x128xf32>
      %41 = arith.mulf %40, %40 : vector<16x128xf32>
      %cst_27 = arith.constant dense<0.000000e+00> : vector<16xf32>
      %42 = vector.multi_reduction <add>, %41, %cst_27 [1] : vector<16x128xf32> to vector<16xf32>
      %43 = vector.shape_cast %42 : vector<16xf32> to vector<16x1xf32>
      %cst_28 = arith.constant 0.010416667 : f32
      %44 = vector.broadcast %cst_28 : f32 to vector<16x1xf32>
      %45 = arith.mulf %43, %44 : vector<16x1xf32>
      %46 = vector.broadcast %36 : vector<16x1xf32> to vector<16x128xf32>
      %47 = arith.subf %25, %46 : vector<16x128xf32>
      %cst_29 = arith.constant 9.99999974E-6 : f32
      %48 = vector.broadcast %cst_29 : f32 to vector<16x1xf32>
      %49 = arith.addf %45, %48 : vector<16x1xf32>
      %50 = math.rsqrt %49 : vector<16x1xf32>
      %51 = vector.broadcast %50 : vector<16x1xf32> to vector<16x128xf32>
      %52 = arith.mulf %47, %51 : vector<16x128xf32>
      %53 = vector.broadcast %26 : vector<1x128xf32> to vector<16x128xf32>
      %54 = arith.mulf %52, %53 : vector<16x128xf32>
      %55 = vector.broadcast %27 : vector<1x128xf32> to vector<16x128xf32>
      %56 = arith.addf %54, %55 : vector<16x128xf32>
      %57 = arith.truncf %56 : vector<16x128xf32> to vector<16x128xbf16>
      %c0_30 = arith.constant 0 : index
      %c0_31 = arith.constant 0 : index
      %58 = vector.load %arg7[%c0_30, %c0_31] : memref<128x128xbf16, #tpu.memory_space<vmem>>, vector<128x128xbf16>
      %cst_32 = arith.constant dense<0.000000e+00> : vector<16x128xf32>
      %59 = tpu.matmul %57, %58, %cst_32 {dimension_numbers = #tpu.dot_dimension_numbers<[1], [0], [0], [1], [0, 0, 1, 1], [], []>} : vector<16x128xbf16>, vector<128x128xbf16>, vector<16x128xf32> -> vector<16x128xf32>
      %c0_33 = arith.constant 0 : index
      %c0_34 = arith.constant 0 : index
      %60 = vector.load %arg8[%c0_33, %c0_34] : memref<1x128xf32, #tpu.memory_space<vmem>>, vector<1x128xf32>
      %61 = vector.broadcast %60 : vector<1x128xf32> to vector<16x128xf32>
      %62 = arith.addf %59, %61 : vector<16x128xf32>
      %cst_35 = arith.constant 0.000000e+00 : f32
      %63 = vector.broadcast %cst_35 : f32 to vector<16x128xf32>
      %64 = arith.maximumf %62, %63 : vector<16x128xf32>
      %c0_36 = arith.constant 0 : index
      %c0_37 = arith.constant 0 : index
      %65 = vector.load %arg9[%c0_36, %c0_37] : memref<1x128xf32, #tpu.memory_space<vmem>>, vector<1x128xf32>
      %c0_38 = arith.constant 0 : index
      %c0_39 = arith.constant 0 : index
      %66 = vector.load %arg10[%c0_38, %c0_39] : memref<1x128xf32, #tpu.memory_space<vmem>>, vector<1x128xf32>
      %67 = tpu.iota {dimensions = array<i32: 1>} : vector<16x128xi32>
      %c96_i32_40 = arith.constant 96 : i32
      %68 = vector.broadcast %c96_i32_40 : i32 to vector<16x128xi32>
      %69 = arith.cmpi slt, %67, %68 : vector<16x128xi32>
      %cst_41 = arith.constant 0.000000e+00 : f32
      %70 = vector.broadcast %cst_41 : f32 to vector<16x128xf32>
      %71 = arith.select %69, %64, %70 : vector<16x128xi1>, vector<16x128xf32>
      %cst_42 = arith.constant dense<0.000000e+00> : vector<16xf32>
      %72 = vector.multi_reduction <add>, %71, %cst_42 [1] : vector<16x128xf32> to vector<16xf32>
      %73 = vector.shape_cast %72 : vector<16xf32> to vector<16x1xf32>
      %cst_43 = arith.constant 0.010416667 : f32
      %74 = vector.broadcast %cst_43 : f32 to vector<16x1xf32>
      %75 = arith.mulf %73, %74 : vector<16x1xf32>
      %76 = vector.broadcast %75 : vector<16x1xf32> to vector<16x128xf32>
      %77 = arith.subf %64, %76 : vector<16x128xf32>
      %cst_44 = arith.constant 0.000000e+00 : f32
      %78 = vector.broadcast %cst_44 : f32 to vector<16x128xf32>
      %79 = arith.select %69, %77, %78 : vector<16x128xi1>, vector<16x128xf32>
      %80 = arith.mulf %79, %79 : vector<16x128xf32>
      %cst_45 = arith.constant dense<0.000000e+00> : vector<16xf32>
      %81 = vector.multi_reduction <add>, %80, %cst_45 [1] : vector<16x128xf32> to vector<16xf32>
      %82 = vector.shape_cast %81 : vector<16xf32> to vector<16x1xf32>
      %cst_46 = arith.constant 0.010416667 : f32
      %83 = vector.broadcast %cst_46 : f32 to vector<16x1xf32>
      %84 = arith.mulf %82, %83 : vector<16x1xf32>
      %85 = vector.broadcast %75 : vector<16x1xf32> to vector<16x128xf32>
      %86 = arith.subf %64, %85 : vector<16x128xf32>
      %cst_47 = arith.constant 9.99999974E-6 : f32
      %87 = vector.broadcast %cst_47 : f32 to vector<16x1xf32>
      %88 = arith.addf %84, %87 : vector<16x1xf32>
      %89 = math.rsqrt %88 : vector<16x1xf32>
      %90 = vector.broadcast %89 : vector<16x1xf32> to vector<16x128xf32>
      %91 = arith.mulf %86, %90 : vector<16x128xf32>
      %92 = vector.broadcast %65 : vector<1x128xf32> to vector<16x128xf32>
      %93 = arith.mulf %91, %92 : vector<16x128xf32>
      %94 = vector.broadcast %66 : vector<1x128xf32> to vector<16x128xf32>
      %95 = arith.addf %93, %94 : vector<16x128xf32>
      %96 = arith.addf %56, %95 : vector<16x128xf32>
      %97 = arith.truncf %96 : vector<16x128xf32> to vector<16x128xbf16>
      %c0_48 = arith.constant 0 : index
      %c0_49 = arith.constant 0 : index
      %98 = vector.load %arg14[%c0_48, %c0_49] : memref<16x128xbf16, #tpu.memory_space<vmem>>, vector<16x128xbf16>
      tpu.vector_store %arg14[%c0_48, %c0_49], %97 {strides = array<i32>} : memref<16x128xbf16, #tpu.memory_space<vmem>>, vector<16x128xbf16>,
    } else {
    }
    %c0 = arith.constant 0 : index
    %c0_1 = arith.constant 0 : index
    %3 = vector.load %arg14[%c0, %c0_1] : memref<16x128xbf16, #tpu.memory_space<vmem>>, vector<16x128xbf16>
    %c0_2 = arith.constant 0 : index
    %c0_3 = arith.constant 0 : index
    %4 = vector.load %arg11[%c0_2, %c0_3] : memref<128x384xbf16, #tpu.memory_space<vmem>>, vector<128x384xbf16>
    %cst = arith.constant dense<0.000000e+00> : vector<16x384xf32>
    %5 = tpu.matmul %3, %4, %cst {dimension_numbers = #tpu.dot_dimension_numbers<[1], [0], [0], [1], [0, 0, 1, 1], [], []>} : vector<16x128xbf16>, vector<128x384xbf16>, vector<16x384xf32> -> vector<16x384xf32>
    %c0_4 = arith.constant 0 : index
    %c0_5 = arith.constant 0 : index
    %6 = vector.load %arg12[%c0_4, %c0_5] : memref<1x384xf32, #tpu.memory_space<vmem>>, vector<1x384xf32>
    %7 = vector.broadcast %6 : vector<1x384xf32> to vector<16x384xf32>
    %8 = arith.addf %5, %7 : vector<16x384xf32>
    %cst_6 = arith.constant 5.000000e-01 : f32
    %9 = vector.broadcast %cst_6 : f32 to vector<16x384xf32>
    %10 = arith.mulf %9, %8 : vector<16x384xf32>
    %11 = math.tanh %10 : vector<16x384xf32>
    %cst_7 = arith.constant 5.000000e-01 : f32
    %12 = vector.broadcast %cst_7 : f32 to vector<16x384xf32>
    %13 = arith.mulf %12, %11 : vector<16x384xf32>
    %cst_8 = arith.constant 5.000000e-01 : f32
    %14 = vector.broadcast %cst_8 : f32 to vector<16x384xf32>
    %15 = arith.addf %13, %14 : vector<16x384xf32>
    %16 = arith.truncf %15 : vector<16x384xf32> to vector<16x384xbf16>
    %c0_9 = arith.constant 0 : index
    %c0_10 = arith.constant 0 : index
    %17 = vector.load %arg13[%c0_9, %c0_10] : memref<16x384xbf16, #tpu.memory_space<vmem>>, vector<16x384xbf16>
    tpu.vector_store %arg13[%c0_9, %c0_10], %16 {strides = array<i32>} : memref<16x384xbf16, #tpu.memory_space<vmem>>, vector<16x384xbf16>,
    return
  }
  func.func @transform_0(%arg0: i32, %arg1: i32) -> (i32, i32) {
    %c0_i32 = arith.constant 0 : i32
    %c0_i32_0 = arith.constant 0 : i32
    return %arg0, %c0_i32 : i32, i32
  }
  func.func @transform_1(%arg0: i32, %arg1: i32) -> (i32, i32) {
    %c0_i32 = arith.constant 0 : i32
    %c0_i32_0 = arith.constant 0 : i32
    %c0_i32_1 = arith.constant 0 : i32
    return %c0_i32, %c0_i32_0 : i32, i32
  }
  func.func @transform_2(%arg0: i32, %arg1: i32) -> (i32, i32) {
    %c0_i32 = arith.constant 0 : i32
    %c0_i32_0 = arith.constant 0 : i32
    %c0_i32_1 = arith.constant 0 : i32
    return %c0_i32, %c0_i32_0 : i32, i32
  }
  func.func @transform_3(%arg0: i32, %arg1: i32) -> (i32, i32) {
    %c0_i32 = arith.constant 0 : i32
    %c0_i32_0 = arith.constant 0 : i32
    %c0_i32_1 = arith.constant 0 : i32
    return %c0_i32, %c0_i32_0 : i32, i32
  }
  func.func @transform_4(%arg0: i32, %arg1: i32) -> (i32, i32) {
    %c0_i32 = arith.constant 0 : i32
    %c0_i32_0 = arith.constant 0 : i32
    %c0_i32_1 = arith.constant 0 : i32
    return %c0_i32, %c0_i32_0 : i32, i32
  }
  func.func @transform_5(%arg0: i32, %arg1: i32) -> (i32, i32) {
    %c0_i32 = arith.constant 0 : i32
    %c0_i32_0 = arith.constant 0 : i32
    %c0_i32_1 = arith.constant 0 : i32
    return %c0_i32, %c0_i32_0 : i32, i32
  }
  func.func @transform_6(%arg0: i32, %arg1: i32) -> (i32, i32) {
    %c0_i32 = arith.constant 0 : i32
    %c0_i32_0 = arith.constant 0 : i32
    %c0_i32_1 = arith.constant 0 : i32
    return %c0_i32, %c0_i32_0 : i32, i32
  }
  func.func @transform_7(%arg0: i32, %arg1: i32) -> (i32, i32) {
    %c0_i32 = arith.constant 0 : i32
    %c0_i32_0 = arith.constant 0 : i32
    %c0_i32_1 = arith.constant 0 : i32
    return %c0_i32, %c0_i32_0 : i32, i32
  }
  func.func @transform_8(%arg0: i32, %arg1: i32) -> (i32, i32) {
    %c0_i32 = arith.constant 0 : i32
    %c0_i32_0 = arith.constant 0 : i32
    %c0_i32_1 = arith.constant 0 : i32
    return %c0_i32, %c0_i32_0 : i32, i32
  }
  func.func @transform_9(%arg0: i32, %arg1: i32) -> (i32, i32) {
    %c0_i32 = arith.constant 0 : i32
    %c0_i32_0 = arith.constant 0 : i32
    %c0_i32_1 = arith.constant 0 : i32
    return %c0_i32, %c0_i32_0 : i32, i32
  }
  func.func @transform_10(%arg0: i32, %arg1: i32) -> (i32, i32) {
    %c0_i32 = arith.constant 0 : i32
    %c0_i32_0 = arith.constant 0 : i32
    %c0_i32_1 = arith.constant 0 : i32
    return %c0_i32, %c0_i32_0 : i32, i32
  }
  func.func @transform_11(%arg0: i32, %arg1: i32) -> (i32, i32) {
    %c0_i32 = arith.constant 0 : i32
    return %arg0, %arg1 : i32, i32
  }
}

</mosaic_0001>

<llo_original>
// kernel: tpu_custom_call.1
$region0: #{tpu_custom_call.1}
  #allocation0 [shape = 'u32[]', space=smem, size = 0x4, offset = 0x4, fixed_abs, tag = 'smem constant byte address 0x4 - core index']
  #allocation1 [shape = 'u32[144,128]{1,0:T(1,128)}', space=vmem, size = 0x12000, scoped, tag = 'internal scratch']
  #allocation2 [shape = 'bf16[16,128]{1,0:T(8,128)(2,1)}', space=vmem, size = 0x1000, scoped, tag = 'scratch operand']
  %s0 = inlined_call_operand.hbm [shape: bf16[32,128], index: 0, kind: input, shape index: {}]
  %s1 = inlined_call_operand.hbm [shape: bf16[128,128], index: 1, kind: input, shape index: {}]
  %s2 = inlined_call_operand.vmem [shape: f32[1,128], index: 2, kind: input, shape index: {}]
  %s3 = inlined_call_operand.vmem [shape: f32[1,128], index: 3, kind: input, shape index: {}]
  %s4 = inlined_call_operand.vmem [shape: f32[1,128], index: 4, kind: input, shape index: {}]
  %s5 = inlined_call_operand.hbm [shape: bf16[128,128], index: 5, kind: input, shape index: {}]
  %s6 = inlined_call_operand.vmem [shape: f32[1,128], index: 6, kind: input, shape index: {}]
  %s7 = inlined_call_operand.vmem [shape: f32[1,128], index: 7, kind: input, shape index: {}]
  %s8 = inlined_call_operand.vmem [shape: f32[1,128], index: 8, kind: input, shape index: {}]
  %s9 = inlined_call_operand.hbm [shape: bf16[128,384], index: 9, kind: input, shape index: {}]
  %s10 = inlined_call_operand.vmem [shape: f32[1,384], index: 10, kind: input, shape index: {}]
  %s11 = inlined_call_operand.hbm [shape: bf16[32,384], index: 11, kind: output, shape index: {}]
  %s12 = sld [smem:[#allocation0]]
  $region97: #{tpu_custom_call.1} parent=0
    _
  %s14 = ssub.s32 1, %s12
  %s15 = scalar_select 0, %s14, %s12
  $region1: #{tpu_custom_call.1} parent=0
    #allocation3 [shape = 'u8[8192]{0}', space=vmem, size = 0x2000, scoped, tag = 'input window, operand 0']
    #allocation4 [shape = 's32[2]{0}', space=sflag, size = 0x8, scoped, tag = 'scoped memory for tpu_custom_call.1']
    #allocation5 [shape = 's32[2]{0}', space=sflag, size = 0x8, scoped, tag = 'scoped memory for tpu_custom_call.1']
    #allocation6 [shape = 'u8[32768]{0}', space=vmem, size = 0x8000, scoped, tag = 'input window, operand 1, single buffered']
    #allocation7 [shape = 's32[1]{0}', space=sflag, size = 0x4, scoped, tag = 'scoped memory for tpu_custom_call.1']
    #allocation8 [shape = 'u8[32768]{0}', space=vmem, size = 0x8000, scoped, tag = 'input window, operand 5, single buffered']
    #allocation9 [shape = 'u8[98304]{0}', space=vmem, size = 0x18000, scoped, tag = 'input window, operand 9, single buffered']
    #allocation10 [shape = 's32[1]{0}', space=sflag, size = 0x4, scoped, tag = 'scoped memory for tpu_custom_call.1']
    #allocation11 [shape = 'u8[24576]{0}', space=vmem, size = 0x6000, scoped, tag = 'output window, operand 0']
    %16 = vsyncpa [#allocation4], 0
    %s17 = scalar_lea.sflag [#allocation4], 1
    %18 = vsyncpa %s17, 0
    %19 = vsyncpa [#allocation7], 0
    %20 = vsyncpa [#allocation10], 0
    %21 = vsyncpa [#allocation5], 0
    %s22 = scalar_lea.sflag [#allocation5], 1
    %23 = vsyncpa %s22, 0
    loop: start=0, step=1, limit=4
    $region2: #{tpu_custom_call.1} parent=1 // loop_pre_header
      _
    $region3: #{tpu_custom_call.1} parent=1 // loop_header
      %s25 = sphi 0, %s29
      %p26 = scmp.ge.s32.totalorder %s25, 4
      %s32 = sphi 0, %s44
      %s33 = sphi 0, %s40
      %s34 = sphi 0, %s32
      %s35 = sphi 0, %s33
      %s36 = sphi 0, %s34
      %s37 = sphi 0, %s35
      %s47 = sphi 0, %s49
      %s50 = sphi 0, %s47
      %s51 = sphi 0, %s50
      %s67 = sphi 0, %s51
      %s71 = sphi 0, %s71
      %s73 = sphi 0, %s71
      %s74 = sphi 0, %s73
      %s88 = sphi 0, %s74
      %s92 = sphi 0, %s92
      %s94 = sphi 0, %s92
      %s95 = sphi 0, %s94
      %s109 = sphi 0, %s95
      %s113 = sphi 0, %s113
      %s115 = sphi 0, %s113
      %s116 = sphi 0, %s115
      %s130 = sphi 0, %s116
      %s134 = sphi 0, %s134
      %s136 = sphi 0, %s134
      %s137 = sphi 0, %s136
      %s151 = sphi 0, %s137
      %s155 = sphi 0, %s155
      %s157 = sphi 0, %s155
      %s158 = sphi 0, %s157
      %s172 = sphi 0, %s158
      %s176 = sphi 0, %s176
      %s178 = sphi 0, %s176
      %s179 = sphi 0, %s178
      %s193 = sphi 0, %s179
      %s197 = sphi 0, %s197
      %s199 = sphi 0, %s197
      %s200 = sphi 0, %s199
      %s214 = sphi 0, %s200
      %s218 = sphi 0, %s218
      %s220 = sphi 0, %s218
      %s221 = sphi 0, %s220
      %s235 = sphi 0, %s221
      %s239 = sphi 0, %s239
      %s241 = sphi 0, %s239
      %s242 = sphi 0, %s241
      %s256 = sphi 0, %s242
      %s260 = sphi 0, %s260
      %s262 = sphi 0, %s260
      %s263 = sphi 0, %s262
      %s277 = sphi 0, %s263
      %s285 = sphi 0, %s287
      %s288 = sphi 0, %s285
      %s289 = sphi 0, %s288
      %s305 = sphi 0, %s289
    $region4: #{tpu_custom_call.1} parent=1 // loop_header_branch
      %28 = sbr.rel (%p26) target = $region8
    $region5: #{tpu_custom_call.1} parent=1 // loop_body
      %s30 = ssub.s32 %s25, 1
      %s31 = ssub.s32 %s25, 2
      %s38 = sadd.s32 1, %s33
      %p39 = scmp.ge.s32.totalorder %s38, 1
      %s40 = scalar_select %p39, 0, %s38
      %s41 = sadd.s32 1, %s32
      %s42 = scalar_select %p39, %s41, %s32
      %p43 = scmp.ge.s32.totalorder %s42, 2
      %s44 = scalar_select %p43, 0, %s42
      %s45 = ssub.s32 %s32, %s44
      %p46 = scmp.eq.s32.totalorder %s45, 0
      %s48 = sadd.s32 %s47, 1
      %s49 = scalar_select %p46, %s47, %s48
      %p52 = pneg %p46
      %p53 = scmp.eq.s32.totalorder %s25, 1
      %p54 = por %p52, %p53
      %p55 = scmp.ne.s32.totalorder %s47, %s50
      %p56 = scmp.eq.s32.totalorder %s25, 0
      %p57 = por %p55, %p56
      %p58 = scmp.ne.s32.totalorder %s47, %s50
      %p59 = scmp.eq.s32.totalorder %s30, 1
      %p60 = por %p58, %p59
      %p61 = scmp.ne.s32.totalorder %s50, %s51
      %p62 = scmp.eq.s32.totalorder %s30, 0
      %p63 = por %p61, %p62
      %p64 = scmp.ne.s32.totalorder %s50, %s51
      %p65 = scmp.eq.s32.totalorder %s31, 1
      %p66 = por %p64, %p65
      %p68 = scmp.ne.s32.totalorder %s51, %s67
      %p69 = scmp.eq.s32.totalorder %s31, 0
      %p70 = por %p68, %p69
      %s72 = sadd.s32 %s71, 1
      %p75 = scmp.eq.s32.totalorder %s25, 1
      %p76 = scmp.ne.s32.totalorder %s71, %s73
      %p77 = scmp.eq.s32.totalorder %s25, 0
      %p78 = por %p76, %p77
      %p79 = scmp.ne.s32.totalorder %s71, %s73
      %p80 = scmp.eq.s32.totalorder %s30, 1
      %p81 = por %p79, %p80
      %p82 = scmp.ne.s32.totalorder %s73, %s74
      %p83 = scmp.eq.s32.totalorder %s30, 0
      %p84 = por %p82, %p83
      %p85 = scmp.ne.s32.totalorder %s73, %s74
      %p86 = scmp.eq.s32.totalorder %s31, 1
      %p87 = por %p85, %p86
      %p89 = scmp.ne.s32.totalorder %s74, %s88
      %p90 = scmp.eq.s32.totalorder %s31, 0
      %p91 = por %p89, %p90
      %s93 = sadd.s32 %s92, 1
      %p96 = scmp.eq.s32.totalorder %s25, 1
      %p97 = scmp.ne.s32.totalorder %s92, %s94
      %p98 = scmp.eq.s32.totalorder %s25, 0
      %p99 = por %p97, %p98
      %p100 = scmp.ne.s32.totalorder %s92, %s94
      %p101 = scmp.eq.s32.totalorder %s30, 1
      %p102 = por %p100, %p101
      %p103 = scmp.ne.s32.totalorder %s94, %s95
      %p104 = scmp.eq.s32.totalorder %s30, 0
      %p105 = por %p103, %p104
      %p106 = scmp.ne.s32.totalorder %s94, %s95
      %p107 = scmp.eq.s32.totalorder %s31, 1
      %p108 = por %p106, %p107
      %p110 = scmp.ne.s32.totalorder %s95, %s109
      %p111 = scmp.eq.s32.totalorder %s31, 0
      %p112 = por %p110, %p111
      %s114 = sadd.s32 %s113, 1
      %p117 = scmp.eq.s32.totalorder %s25, 1
      %p118 = scmp.ne.s32.totalorder %s113, %s115
      %p119 = scmp.eq.s32.totalorder %s25, 0
      %p120 = por %p118, %p119
      %p121 = scmp.ne.s32.totalorder %s113, %s115
      %p122 = scmp.eq.s32.totalorder %s30, 1
      %p123 = por %p121, %p122
      %p124 = scmp.ne.s32.totalorder %s115, %s116
      %p125 = scmp.eq.s32.totalorder %s30, 0
      %p126 = por %p124, %p125
      %p127 = scmp.ne.s32.totalorder %s115, %s116
      %p128 = scmp.eq.s32.totalorder %s31, 1
      %p129 = por %p127, %p128
      %p131 = scmp.ne.s32.totalorder %s116, %s130
      %p132 = scmp.eq.s32.totalorder %s31, 0
      %p133 = por %p131, %p132
      %s135 = sadd.s32 %s134, 1
      %p138 = scmp.eq.s32.totalorder %s25, 1
      %p139 = scmp.ne.s32.totalorder %s134, %s136
      %p140 = scmp.eq.s32.totalorder %s25, 0
      %p141 = por %p139, %p140
      %p142 = scmp.ne.s32.totalorder %s134, %s136
      %p143 = scmp.eq.s32.totalorder %s30, 1
      %p144 = por %p142, %p143
      %p145 = scmp.ne.s32.totalorder %s136, %s137
      %p146 = scmp.eq.s32.totalorder %s30, 0
      %p147 = por %p145, %p146
      %p148 = scmp.ne.s32.totalorder %s136, %s137
      %p149 = scmp.eq.s32.totalorder %s31, 1
      %p150 = por %p148, %p149
      %p152 = scmp.ne.s32.totalorder %s137, %s151
      %p153 = scmp.eq.s32.totalorder %s31, 0
      %p154 = por %p152, %p153
      %s156 = sadd.s32 %s155, 1
      %p159 = scmp.eq.s32.totalorder %s25, 1
      %p160 = scmp.ne.s32.totalorder %s155, %s157
      %p161 = scmp.eq.s32.totalorder %s25, 0
      %p162 = por %p160, %p161
      %p163 = scmp.ne.s32.totalorder %s155, %s157
      %p164 = scmp.eq.s32.totalorder %s30, 1
      %p165 = por %p163, %p164
      %p166 = scmp.ne.s32.totalorder %s157, %s158
      %p167 = scmp.eq.s32.totalorder %s30, 0
      %p168 = por %p166, %p167
      %p169 = scmp.ne.s32.totalorder %s157, %s158
      %p170 = scmp.eq.s32.totalorder %s31, 1
      %p171 = por %p169, %p170
      %p173 = scmp.ne.s32.totalorder %s158, %s172
      %p174 = scmp.eq.s32.totalorder %s31, 0
      %p175 = por %p173, %p174
      %s177 = sadd.s32 %s176, 1
      %p180 = scmp.eq.s32.totalorder %s25, 1
      %p181 = scmp.ne.s32.totalorder %s176, %s178
      %p182 = scmp.eq.s32.totalorder %s25, 0
      %p183 = por %p181, %p182
      %p184 = scmp.ne.s32.totalorder %s176, %s178
      %p185 = scmp.eq.s32.totalorder %s30, 1
      %p186 = por %p184, %p185
      %p187 = scmp.ne.s32.totalorder %s178, %s179
      %p188 = scmp.eq.s32.totalorder %s30, 0
      %p189 = por %p187, %p188
      %p190 = scmp.ne.s32.totalorder %s178, %s179
      %p191 = scmp.eq.s32.totalorder %s31, 1
      %p192 = por %p190, %p191
      %p194 = scmp.ne.s32.totalorder %s179, %s193
      %p195 = scmp.eq.s32.totalorder %s31, 0
      %p196 = por %p194, %p195
      %s198 = sadd.s32 %s197, 1
      %p201 = scmp.eq.s32.totalorder %s25, 1
      %p202 = scmp.ne.s32.totalorder %s197, %s199
      %p203 = scmp.eq.s32.totalorder %s25, 0
      %p204 = por %p202, %p203
      %p205 = scmp.ne.s32.totalorder %s197, %s199
      %p206 = scmp.eq.s32.totalorder %s30, 1
      %p207 = por %p205, %p206
      %p208 = scmp.ne.s32.totalorder %s199, %s200
      %p209 = scmp.eq.s32.totalorder %s30, 0
      %p210 = por %p208, %p209
      %p211 = scmp.ne.s32.totalorder %s199, %s200
      %p212 = scmp.eq.s32.totalorder %s31, 1
      %p213 = por %p211, %p212
      %p215 = scmp.ne.s32.totalorder %s200, %s214
      %p216 = scmp.eq.s32.totalorder %s31, 0
      %p217 = por %p215, %p216
      %s219 = sadd.s32 %s218, 1
      %p222 = scmp.eq.s32.totalorder %s25, 1
      %p223 = scmp.ne.s32.totalorder %s218, %s220
      %p224 = scmp.eq.s32.totalorder %s25, 0
      %p225 = por %p223, %p224
      %p226 = scmp.ne.s32.totalorder %s218, %s220
      %p227 = scmp.eq.s32.totalorder %s30, 1
      %p228 = por %p226, %p227
      %p229 = scmp.ne.s32.totalorder %s220, %s221
      %p230 = scmp.eq.s32.totalorder %s30, 0
      %p231 = por %p229, %p230
      %p232 = scmp.ne.s32.totalorder %s220, %s221
      %p233 = scmp.eq.s32.totalorder %s31, 1
      %p234 = por %p232, %p233
      %p236 = scmp.ne.s32.totalorder %s221, %s235
      %p237 = scmp.eq.s32.totalorder %s31, 0
      %p238 = por %p236, %p237
      %s240 = sadd.s32 %s239, 1
      %p243 = scmp.eq.s32.totalorder %s25, 1
      %p244 = scmp.ne.s32.totalorder %s239, %s241
      %p245 = scmp.eq.s32.totalorder %s25, 0
      %p246 = por %p244, %p245
      %p247 = scmp.ne.s32.totalorder %s239, %s241
      %p248 = scmp.eq.s32.totalorder %s30, 1
      %p249 = por %p247, %p248
      %p250 = scmp.ne.s32.totalorder %s241, %s242
      %p251 = scmp.eq.s32.totalorder %s30, 0
      %p252 = por %p250, %p251
      %p253 = scmp.ne.s32.totalorder %s241, %s242
      %p254 = scmp.eq.s32.totalorder %s31, 1
      %p255 = por %p253, %p254
      %p257 = scmp.ne.s32.totalorder %s242, %s256
      %p258 = scmp.eq.s32.totalorder %s31, 0
      %p259 = por %p257, %p258
      %s261 = sadd.s32 %s260, 1
      %p264 = scmp.eq.s32.totalorder %s25, 1
      %p265 = scmp.ne.s32.totalorder %s260, %s262
      %p266 = scmp.eq.s32.totalorder %s25, 0
      %p267 = por %p265, %p266
      %p268 = scmp.ne.s32.totalorder %s260, %s262
      %p269 = scmp.eq.s32.totalorder %s30, 1
      %p270 = por %p268, %p269
      %p271 = scmp.ne.s32.totalorder %s262, %s263
      %p272 = scmp.eq.s32.totalorder %s30, 0
      %p273 = por %p271, %p272
      %p274 = scmp.ne.s32.totalorder %s262, %s263
      %p275 = scmp.eq.s32.totalorder %s31, 1
      %p276 = por %p274, %p275
      %p278 = scmp.ne.s32.totalorder %s263, %s277
      %p279 = scmp.eq.s32.totalorder %s31, 0
      %p280 = por %p278, %p279
      %s281 = ssub.s32 %s32, %s44
      %s282 = ssub.s32 %s33, %s40
      %s283 = sor.u32 %s281, %s282
      %p284 = scmp.eq.s32.totalorder %s283, 0
      %s286 = sadd.s32 %s285, 1
      %s287 = scalar_select %p284, %s285, %s286
      %p290 = pneg %p284
      %p291 = scmp.eq.s32.totalorder %s25, 1
      %p292 = por %p290, %p291
      %p293 = scmp.ne.s32.totalorder %s285, %s288
      %p294 = scmp.eq.s32.totalorder %s25, 0
      %p295 = por %p293, %p294
      %p296 = scmp.ne.s32.totalorder %s285, %s288
      %p297 = scmp.eq.s32.totalorder %s30, 1
      %p298 = por %p296, %p297
      %p299 = scmp.ne.s32.totalorder %s288, %s289
      %p300 = scmp.eq.s32.totalorder %s30, 0
      %p301 = por %p299, %p300
      %p302 = scmp.ne.s32.totalorder %s288, %s289
      %p303 = scmp.eq.s32.totalorder %s31, 1
      %p304 = por %p302, %p303
      %p306 = scmp.ne.s32.totalorder %s289, %s305
      %p307 = scmp.eq.s32.totalorder %s31, 0
      %p308 = por %p306, %p307
      %p309 = scmp.le.s32.totalorder 1, %s25
      %p310 = scmp.lt.s32.totalorder %s25, 3
      %p311 = pnand %p309, %p310
      %p312 = pneg %p311
      // Predicated region
      $region9: #{tpu_custom_call.1} parent=5 // pred_check
        _
      $region10: #{tpu_custom_call.1} parent=5 // pred_check_branch
        %314 = sbr.rel (%p311) target = $region12
      $region11: #{tpu_custom_call.1} parent=5 // pred_region
        %s315 = ssub.s32 %s25, 1
        // Predicated region
        $region13: #{tpu_custom_call.1} parent=11 // pred_check
          %p316 = pneg %p84
        $region14: #{tpu_custom_call.1} parent=11 // pred_check_branch
          %318 = sbr.rel (%p316) target = $region16
        $region15: #{tpu_custom_call.1} parent=11 // pred_region
          %s320 = ssub.s32 1024, 1024
          %321 = vsyncadd [#allocation7], %s320
          %s322 = sshll.u32 [#allocation6], 4
          %s323 = int_to_ptr.vmem [resolvable:$true] %s322
          %328 = dma.hbm_to_vmem [thread:$0]  %s1, 1024, %s323, [#allocation7], 64, 64, 4
        $region16: #{tpu_custom_call.1} parent=11 // pred_fallthru
          _
        // Predicated region
        $region17: #{tpu_custom_call.1} parent=11 // pred_check
          %p329 = pneg %p105
        $region18: #{tpu_custom_call.1} parent=11 // pred_check_branch
          %331 = sbr.rel (%p329) target = $region20
        $region19: #{tpu_custom_call.1} parent=11 // pred_region
          _
        $region20: #{tpu_custom_call.1} parent=11 // pred_fallthru
          _
        // Predicated region
        $region21: #{tpu_custom_call.1} parent=11 // pred_check
          %p332 = pneg %p126
        $region22: #{tpu_custom_call.1} parent=11 // pred_check_branch
          %334 = sbr.rel (%p332) target = $region24
        $region23: #{tpu_custom_call.1} parent=11 // pred_region
          _
        $region24: #{tpu_custom_call.1} parent=11 // pred_fallthru
          _
        // Predicated region
        $region25: #{tpu_custom_call.1} parent=11 // pred_check
          %p335 = pneg %p147
        $region26: #{tpu_custom_call.1} parent=11 // pred_check_branch
          %337 = sbr.rel (%p335) target = $region28
        $region27: #{tpu_custom_call.1} parent=11 // pred_region
          _
        $region28: #{tpu_custom_call.1} parent=11 // pred_fallthru
          _
        // Predicated region
        $region29: #{tpu_custom_call.1} parent=11 // pred_check
          %p338 = pneg %p168
        $region30: #{tpu_custom_call.1} parent=11 // pred_check_branch
          %340 = sbr.rel (%p338) target = $region32
        $region31: #{tpu_custom_call.1} parent=11 // pred_region
          %s342 = ssub.s32 1024, 1024
          %343 = vsyncadd [#allocation7], %s342
          %s344 = sshll.u32 [#allocation8], 4
          %s345 = int_to_ptr.vmem [resolvable:$true] %s344
          %350 = dma.hbm_to_vmem [thread:$0]  %s5, 1024, %s345, [#allocation7], 64, 64, 4
        $region32: #{tpu_custom_call.1} parent=11 // pred_fallthru
          _
        // Predicated region
        $region33: #{tpu_custom_call.1} parent=11 // pred_check
          %p351 = pneg %p189
        $region34: #{tpu_custom_call.1} parent=11 // pred_check_branch
          %353 = sbr.rel (%p351) target = $region36
        $region35: #{tpu_custom_call.1} parent=11 // pred_region
          _
        $region36: #{tpu_custom_call.1} parent=11 // pred_fallthru
          _
        // Predicated region
        $region37: #{tpu_custom_call.1} parent=11 // pred_check
          %p354 = pneg %p210
        $region38: #{tpu_custom_call.1} parent=11 // pred_check_branch
          %356 = sbr.rel (%p354) target = $region40
        $region39: #{tpu_custom_call.1} parent=11 // pred_region
          _
        $region40: #{tpu_custom_call.1} parent=11 // pred_fallthru
          _
        // Predicated region
        $region41: #{tpu_custom_call.1} parent=11 // pred_check
          %p357 = pneg %p231
        $region42: #{tpu_custom_call.1} parent=11 // pred_check_branch
          %359 = sbr.rel (%p357) target = $region44
        $region43: #{tpu_custom_call.1} parent=11 // pred_region
          _
        $region44: #{tpu_custom_call.1} parent=11 // pred_fallthru
          _
        // Predicated region
        $region45: #{tpu_custom_call.1} parent=11 // pred_check
          %p360 = pneg %p252
        $region46: #{tpu_custom_call.1} parent=11 // pred_check_branch
          %362 = sbr.rel (%p360) target = $region48
        $region47: #{tpu_custom_call.1} parent=11 // pred_region
          %s364 = ssub.s32 3072, 3072
          %365 = vsyncadd [#allocation10], %s364
          %s366 = sshll.u32 [#allocation9], 4
          %s367 = int_to_ptr.vmem [resolvable:$true] %s366
          %372 = dma.hbm_to_vmem [thread:$0]  %s9, 3072, %s367, [#allocation10], 192, 192, 12
        $region48: #{tpu_custom_call.1} parent=11 // pred_fallthru
          _
        // Predicated region
        $region49: #{tpu_custom_call.1} parent=11 // pred_check
          %p373 = pneg %p273
        $region50: #{tpu_custom_call.1} parent=11 // pred_check_branch
          %375 = sbr.rel (%p373) target = $region52
        $region51: #{tpu_custom_call.1} parent=11 // pred_region
          _
        $region52: #{tpu_custom_call.1} parent=11 // pred_fallthru
          _
      $region12: #{tpu_custom_call.1} parent=5 // pred_fallthru
        _
      %p376 = scmp.lt.s32.totalorder %s25, 2
      // Predicated region
      $region53: #{tpu_custom_call.1} parent=5 // pred_check
        %p377 = pneg %p376
      $region54: #{tpu_custom_call.1} parent=5 // pred_check_branch
        %379 = sbr.rel (%p377) target = $region56
      $region55: #{tpu_custom_call.1} parent=5 // pred_region
        // Predicated region
        $region57: #{tpu_custom_call.1} parent=55 // pred_check
          %p380 = pneg %p57
        $region58: #{tpu_custom_call.1} parent=55 // pred_check_branch
          %382 = sbr.rel (%p380) target = $region60
        $region59: #{tpu_custom_call.1} parent=55 // pred_region
          %s383 = sand.u32 %s47, 1
          %s384 = scalar_lea.sflag [#allocation4], %s383
          %s385 = sand.u32 %s47, 1
          %s386 = smul.addr %s385, 8
          %s387 = scalar_lea.vmem [#allocation3], %s386
          %s388 = smul.u32 2, %s32
          %s390 = ssub.s32 128, 128
          %391 = vsyncadd %s384, %s390
          %s392 = smul.addr %s388, 64
          %s393 = scalar_lea.hbm %s0, %s392
          %s394 = sshll.u32 %s387, 4
          %s395 = int_to_ptr.vmem [resolvable:$true] %s394
          %400 = dma.hbm_to_vmem [thread:$0]  %s393, 128, %s395, %s384, 64, 64, 4
        $region60: #{tpu_custom_call.1} parent=55 // pred_fallthru
          _
      $region56: #{tpu_custom_call.1} parent=5 // pred_fallthru
        _
      %p401 = scmp.le.s32.totalorder 1, %s25
      %p402 = scmp.lt.s32.totalorder %s25, 3
      %p403 = pnand %p401, %p402
      %p404 = pneg %p403
      // Predicated region
      $region61: #{tpu_custom_call.1} parent=5 // pred_check
        _
      $region62: #{tpu_custom_call.1} parent=5 // pred_check_branch
        %406 = sbr.rel (%p403) target = $region64
      $region63: #{tpu_custom_call.1} parent=5 // pred_region
        %s407 = ssub.s32 %s25, 1
        %s408 = sand.u32 %s50, 1
        %s409 = scalar_lea.sflag [#allocation4], %s408
        %s410 = sand.u32 %s50, 1
        %s411 = smul.addr %s410, 8
        %s412 = scalar_lea.vmem [#allocation3], %s411
        // Predicated region
        $region65: #{tpu_custom_call.1} parent=63 // pred_check
          %p413 = pneg %p63
        $region66: #{tpu_custom_call.1} parent=63 // pred_check_branch
          %415 = sbr.rel (%p413) target = $region68
        $region67: #{tpu_custom_call.1} parent=63 // pred_region
          %416 = dma.done %s409, 128
        $region68: #{tpu_custom_call.1} parent=63 // pred_fallthru
          _
        // Predicated region
        $region69: #{tpu_custom_call.1} parent=63 // pred_check
          %p417 = pneg %p84
        $region70: #{tpu_custom_call.1} parent=63 // pred_check_branch
          %419 = sbr.rel (%p417) target = $region72
        $region71: #{tpu_custom_call.1} parent=63 // pred_region
          %420 = dma.done [#allocation7], 1024
        $region72: #{tpu_custom_call.1} parent=63 // pred_fallthru
          _
        // Predicated region
        $region73: #{tpu_custom_call.1} parent=63 // pred_check
          %p421 = pneg %p168
        $region74: #{tpu_custom_call.1} parent=63 // pred_check_branch
          %423 = sbr.rel (%p421) target = $region76
        $region75: #{tpu_custom_call.1} parent=63 // pred_region
          %424 = dma.done [#allocation7], 1024
        $region76: #{tpu_custom_call.1} parent=63 // pred_fallthru
          _
        // Predicated region
        $region77: #{tpu_custom_call.1} parent=63 // pred_check
          %p425 = pneg %p252
        $region78: #{tpu_custom_call.1} parent=63 // pred_check_branch
          %427 = sbr.rel (%p425) target = $region80
        $region79: #{tpu_custom_call.1} parent=63 // pred_region
          %428 = dma.done [#allocation10], 3072
        $region80: #{tpu_custom_call.1} parent=63 // pred_fallthru
          _
        %s429 = sand.u32 %s50, 1
        %s430 = scalar_lea.sflag [#allocation4], %s429
        %s431 = sand.u32 %s50, 1
        %s432 = smul.addr %s431, 8
        %s433 = scalar_lea.vmem [#allocation3], %s432
        %p434 = pneg %p63
        %p435 = pneg %p60
        %p436 = pneg %p84
        %p437 = pneg %p81
        %p438 = pneg %p105
        %p439 = pneg %p102
        %p440 = pneg %p126
        %p441 = pneg %p123
        %p442 = pneg %p147
        %p443 = pneg %p144
        %p444 = pneg %p168
        %p445 = pneg %p165
        %p446 = pneg %p189
        %p447 = pneg %p186
        %p448 = pneg %p210
        %p449 = pneg %p207
        %p450 = pneg %p231
        %p451 = pneg %p228
        %p452 = pneg %p252
        %p453 = pneg %p249
        %p454 = pneg %p273
        %p455 = pneg %p270
        %p456 = pneg %p301
        %p457 = pneg %p298
        %s458 = sand.u32 %s288, 1
        %s459 = scalar_lea.sflag [#allocation5], %s458
        %s460 = sand.u32 %s288, 1
        %s461 = smul.addr %s460, 24
        %s462 = scalar_lea.vmem [#allocation11], %s461
        %s463 = smul.u32 2, %s34
        %s464 = smul.u32 2, %s34
        %s465 = smul.u32 3, %s35
        %p467 = scmp.eq.s32.totalorder %s35, 0
        // Predicated region
        $region81: #{tpu_custom_call.1} parent=63 // pred_check
          %p468 = pneg %p467
        $region82: #{tpu_custom_call.1} parent=63 // pred_check_branch
          %470 = sbr.rel (%p468) target = $region84
        $region83: #{tpu_custom_call.1} parent=63 // pred_region
          %v471 = vld [vmem:[%s412] sm:$0xf]
          %v472 = vld [vmem:[%s412 + $0x4] sm:$0xf]
          %v473 = vld [vmem:[#allocation6] sm:$0xf]
          %v474 = vld [vmem:[#allocation6 + $0x4] sm:$0xf]
          %v475 = vld [vmem:[#allocation6 + $0x8] sm:$0xf]
          %v476 = vld [vmem:[#allocation6 + $0xc] sm:$0xf]
          %v477 = vld [vmem:[#allocation6 + $0x10] sm:$0xf]
          %v478 = vld [vmem:[#allocation6 + $0x14] sm:$0xf]
          %v479 = vld [vmem:[#allocation6 + $0x18] sm:$0xf]
          %v480 = vld [vmem:[#allocation6 + $0x1c] sm:$0xf]
          %v481 = vld [vmem:[#allocation6 + $0x20] sm:$0xf]
          %v482 = vld [vmem:[#allocation6 + $0x24] sm:$0xf]
          %v483 = vld [vmem:[#allocation6 + $0x28] sm:$0xf]
          %v484 = vld [vmem:[#allocation6 + $0x2c] sm:$0xf]
          %v485 = vld [vmem:[#allocation6 + $0x30] sm:$0xf]
          %v486 = vld [vmem:[#allocation6 + $0x34] sm:$0xf]
          %v487 = vld [vmem:[#allocation6 + $0x38] sm:$0xf]
          %v488 = vld [vmem:[#allocation6 + $0x3c] sm:$0xf]
          %v489 = vld [vmem:[%s2] sm:$0x1]
          %v491 = vlaneseq
          %v492 = vshrl.u32 %v491, 7
          %v493 = vsub.s32 0, %v492
          %v494 = vrot.slane %v489, %v493
          %v498 = vunpack.c.l.b16 %v471
          %v499 = vunpack.c.l.b16 %v472
          %v500 = vpack.c.b16 %v499, %v498
          %v518 = vunpack.c.l.b16 %v473
          %v519 = vunpack.c.l.b16 %v474
          %v520 = vunpack.c.l.b16 %v475
          %v521 = vunpack.c.l.b16 %v476
          %v522 = vunpack.c.l.b16 %v477
          %v523 = vunpack.c.l.b16 %v478
          %v524 = vunpack.c.l.b16 %v479
          %v525 = vunpack.c.l.b16 %v480
          %v526 = vunpack.c.l.b16 %v481
          %v527 = vunpack.c.l.b16 %v482
          %v528 = vunpack.c.l.b16 %v483
          %v529 = vunpack.c.l.b16 %v484
          %v530 = vunpack.c.l.b16 %v485
          %v531 = vunpack.c.l.b16 %v486
          %v532 = vunpack.c.l.b16 %v487
          %v533 = vunpack.c.l.b16 %v488
          %v534 = vpack.c.b16 %v519, %v518
          %v535 = vpack.c.b16 %v521, %v520
          %v536 = vpack.c.b16 %v523, %v522
          %v537 = vpack.c.b16 %v525, %v524
          %v538 = vpack.c.b16 %v527, %v526
          %v539 = vpack.c.b16 %v529, %v528
          %v540 = vpack.c.b16 %v531, %v530
          %v541 = vpack.c.b16 %v533, %v532
          %550 = vmatprep.subr.bf16.mxu0 0
          %551 = vmatpush1.bf16.msra.mxu0 %v541
          %552 = vmatprep.subr.bf16.mxu0 0
          %553 = vmatpush1.bf16.msra.mxu0 %v540
          %554 = vmatprep.subr.bf16.mxu0 0
          %555 = vmatpush1.bf16.msra.mxu0 %v539
          %556 = vmatprep.subr.bf16.mxu0 0
          %557 = vmatpush1.bf16.msra.mxu0 %v538
          %558 = vmatprep.subr.bf16.mxu0 0
          %559 = vmatpush1.bf16.msra.mxu0 %v537
          %560 = vmatprep.subr.bf16.mxu0 0
          %561 = vmatpush1.bf16.msra.mxu0 %v536
          %562 = vmatprep.subr.bf16.mxu0 0
          %563 = vmatpush1.bf16.msra.mxu0 %v535
          %564 = vmatprep.subr.bf16.mxu0 0
          %565 = vmatpush1.bf16.msra.mxu0 %v534
          %566 = vmatprep.subr.bf16.mxu0 0
          %567 = vmatpush2.bf16.msra.mxu0 0
          %568 = vmatprep.subr.bf16.mxu0 0
          %569 = vmatpush2.bf16.msra.mxu0 0
          %570 = vmatprep.subr.bf16.mxu0 0
          %571 = vmatpush2.bf16.msra.mxu0 0
          %572 = vmatprep.subr.bf16.mxu0 0
          %573 = vmatpush2.bf16.msra.mxu0 0
          %574 = vmatprep.subr.bf16.mxu0 0
          %575 = vmatpush2.bf16.msra.mxu0 0
          %576 = vmatprep.subr.bf16.mxu0 0
          %577 = vmatpush2.bf16.msra.mxu0 0
          %578 = vmatprep.subr.bf16.mxu0 0
          %579 = vmatpush2.bf16.msra.mxu0 0
          %580 = vmatprep.subr.bf16.mxu0 0
          %581 = vmatpush2.bf16.msra.mxu0 0
          %582 = vmatprep.mubr.bf16.mxu0 0
          %583 = vmatmul.mubr.bf16.gmra.mxu0 %v500
          %v584 = vpop.f32.mrf.mxu0
          %v585 = vadd.f32 %v494, %v584
          %v586 = vpop.f32.mrf.mxu0
          %v587 = vpop.f32.mrf.mxu0
          %v588 = vadd.f32 %v494, %v587
          %v589 = vpop.f32.mrf.mxu0
          %590 = vdwg.mxu0
          %v591 = vmax.f32 %v585, 0.0
          %v592 = vmax.f32 %v588, 0.0
          %v593 = vld [vmem:[%s3] sm:$0x1]
          %v594 = vld [vmem:[%s4] sm:$0x1]
          %v595 = vlaneseq
          %v596 = vand.u32 %v595, 127
          %vm597 = vcmp.lt.s32.totalorder %v596, 96
          %v598 = vsel %vm597, %v591, 0.0
          %v599 = vsel %vm597, %v592, 0.0
          %600 = vadd.xlane.f32.xlu0 %v598
          %v601 = vpop.xlane.xlu0 %600
          %602 = vadd.xlane.f32.xlu0 %v599
          %v603 = vpop.xlane.xlu0 %602
          %v604 = vmul.f32 %v601, 0.010416667
          %v605 = vmul.f32 %v603, 0.010416667
          %v606 = vsub.f32 %v591, %v604
          %v607 = vsub.f32 %v592, %v605
          %v608 = vsel %vm597, %v606, 0.0
          %v609 = vsel %vm597, %v607, 0.0
          %v610 = vmul.f32 %v608, %v608
          %v611 = vmul.f32 %v609, %v609
          %612 = vadd.xlane.f32.xlu0 %v610
          %v613 = vpop.xlane.xlu0 %612
          %614 = vadd.xlane.f32.xlu0 %v611
          %v615 = vpop.xlane.xlu0 %614
          %v616 = vmul.f32 %v613, 0.010416667
          %v617 = vmul.f32 %v615, 0.010416667
          %v618 = vadd.f32 %v616, 1e-05
          %v619 = vadd.f32 %v617, 1e-05
          %v620 = vrsqrt.pop %v618
          %v621 = vrsqrt.pop %v619
          %v622 = vmul.f32 %v606, %v620
          %v623 = vmul.f32 %v607, %v621
          %v625 = vlaneseq
          %v626 = vshrl.u32 %v625, 7
          %v627 = vsub.s32 0, %v626
          %v628 = vrot.slane %v593, %v627
          %v630 = vmul.f32 %v622, %v628
          %v631 = vmul.f32 %v623, %v628
          %v633 = vlaneseq
          %v634 = vshrl.u32 %v633, 7
          %v635 = vsub.s32 0, %v634
          %v636 = vrot.slane %v594, %v635
          %v638 = vadd.f32 %v630, %v636
          %v639 = vadd.f32 %v631, %v636
          %v640 = vpack.c.bf16 %v639, %v638
          %v641 = vld [vmem:[#allocation8] sm:$0xf]
          %v642 = vld [vmem:[#allocation8 + $0x4] sm:$0xf]
          %v643 = vld [vmem:[#allocation8 + $0x8] sm:$0xf]
          %v644 = vld [vmem:[#allocation8 + $0xc] sm:$0xf]
          %v645 = vld [vmem:[#allocation8 + $0x10] sm:$0xf]
          %v646 = vld [vmem:[#allocation8 + $0x14] sm:$0xf]
          %v647 = vld [vmem:[#allocation8 + $0x18] sm:$0xf]
          %v648 = vld [vmem:[#allocation8 + $0x1c] sm:$0xf]
          %v649 = vld [vmem:[#allocation8 + $0x20] sm:$0xf]
          %v650 = vld [vmem:[#allocation8 + $0x24] sm:$0xf]
          %v651 = vld [vmem:[#allocation8 + $0x28] sm:$0xf]
          %v652 = vld [vmem:[#allocation8 + $0x2c] sm:$0xf]
          %v653 = vld [vmem:[#allocation8 + $0x30] sm:$0xf]
          %v654 = vld [vmem:[#allocation8 + $0x34] sm:$0xf]
          %v655 = vld [vmem:[#allocation8 + $0x38] sm:$0xf]
          %v656 = vld [vmem:[#allocation8 + $0x3c] sm:$0xf]
          %v657 = vld [vmem:[%s6] sm:$0x1]
          %v659 = vlaneseq
          %v660 = vshrl.u32 %v659, 7
          %v661 = vsub.s32 0, %v660
          %v662 = vrot.slane %v657, %v661
          %v680 = vunpack.c.l.b16 %v641
          %v681 = vunpack.c.l.b16 %v642
          %v682 = vunpack.c.l.b16 %v643
          %v683 = vunpack.c.l.b16 %v644
          %v684 = vunpack.c.l.b16 %v645
          %v685 = vunpack.c.l.b16 %v646
          %v686 = vunpack.c.l.b16 %v647
          %v687 = vunpack.c.l.b16 %v648
          %v688 = vunpack.c.l.b16 %v649
          %v689 = vunpack.c.l.b16 %v650
          %v690 = vunpack.c.l.b16 %v651
          %v691 = vunpack.c.l.b16 %v652
          %v692 = vunpack.c.l.b16 %v653
          %v693 = vunpack.c.l.b16 %v654
          %v694 = vunpack.c.l.b16 %v655
          %v695 = vunpack.c.l.b16 %v656
          %v696 = vpack.c.b16 %v681, %v680
          %v697 = vpack.c.b16 %v683, %v682
          %v698 = vpack.c.b16 %v685, %v684
          %v699 = vpack.c.b16 %v687, %v686
          %v700 = vpack.c.b16 %v689, %v688
          %v701 = vpack.c.b16 %v691, %v690
          %v702 = vpack.c.b16 %v693, %v692
          %v703 = vpack.c.b16 %v695, %v694
          %712 = vmatprep.subr.bf16.mxu0 0
          %713 = vmatpush1.bf16.msra.mxu0 %v703
          %714 = vmatprep.subr.bf16.mxu0 0
          %715 = vmatpush1.bf16.msra.mxu0 %v702
          %716 = vmatprep.subr.bf16.mxu0 0
          %717 = vmatpush1.bf16.msra.mxu0 %v701
          %718 = vmatprep.subr.bf16.mxu0 0
          %719 = vmatpush1.bf16.msra.mxu0 %v700
          %720 = vmatprep.subr.bf16.mxu0 0
          %721 = vmatpush1.bf16.msra.mxu0 %v699
          %722 = vmatprep.subr.bf16.mxu0 0
          %723 = vmatpush1.bf16.msra.mxu0 %v698
          %724 = vmatprep.subr.bf16.mxu0 0
          %725 = vmatpush1.bf16.msra.mxu0 %v697
          %726 = vmatprep.subr.bf16.mxu0 0
          %727 = vmatpush1.bf16.msra.mxu0 %v696
          %728 = vmatprep.subr.bf16.mxu0 0
          %729 = vmatpush2.bf16.msra.mxu0 0
          %730 = vmatprep.subr.bf16.mxu0 0
          %731 = vmatpush2.bf16.msra.mxu0 0
          %732 = vmatprep.subr.bf16.mxu0 0
          %733 = vmatpush2.bf16.msra.mxu0 0
          %734 = vmatprep.subr.bf16.mxu0 0
          %735 = vmatpush2.bf16.msra.mxu0 0
          %736 = vmatprep.subr.bf16.mxu0 0
          %737 = vmatpush2.bf16.msra.mxu0 0
          %738 = vmatprep.subr.bf16.mxu0 0
          %739 = vmatpush2.bf16.msra.mxu0 0
          %740 = vmatprep.subr.bf16.mxu0 0
          %741 = vmatpush2.bf16.msra.mxu0 0
          %742 = vmatprep.subr.bf16.mxu0 0
          %743 = vmatpush2.bf16.msra.mxu0 0
          %744 = vmatprep.mubr.bf16.mxu0 0
          %745 = vmatmul.mubr.bf16.gmra.mxu0 %v640
          %v746 = vpop.f32.mrf.mxu0
          %v747 = vadd.f32 %v662, %v746
          %v748 = vpop.f32.mrf.mxu0
          %v749 = vpop.f32.mrf.mxu0
          %v750 = vadd.f32 %v662, %v749
          %v751 = vpop.f32.mrf.mxu0
          %752 = vdwg.mxu0
          %v753 = vmax.f32 %v747, 0.0
          %v754 = vmax.f32 %v750, 0.0
          %v755 = vld [vmem:[%s7] sm:$0x1]
          %v756 = vld [vmem:[%s8] sm:$0x1]
          %v757 = vsel %vm597, %v753, 0.0
          %v758 = vsel %vm597, %v754, 0.0
          %759 = vadd.xlane.f32.xlu0 %v757
          %v760 = vpop.xlane.xlu0 %759
          %761 = vadd.xlane.f32.xlu0 %v758
          %v762 = vpop.xlane.xlu0 %761
          %v763 = vmul.f32 %v760, 0.010416667
          %v764 = vmul.f32 %v762, 0.010416667
          %v765 = vsub.f32 %v753, %v763
          %v766 = vsub.f32 %v754, %v764
          %v767 = vsel %vm597, %v765, 0.0
          %v768 = vsel %vm597, %v766, 0.0
          %v769 = vmul.f32 %v767, %v767
          %v770 = vmul.f32 %v768, %v768
          %771 = vadd.xlane.f32.xlu0 %v769
          %v772 = vpop.xlane.xlu0 %771
          %773 = vadd.xlane.f32.xlu0 %v770
          %v774 = vpop.xlane.xlu0 %773
          %v775 = vmul.f32 %v772, 0.010416667
          %v776 = vmul.f32 %v774, 0.010416667
          %v777 = vadd.f32 %v775, 1e-05
          %v778 = vadd.f32 %v776, 1e-05
          %v779 = vrsqrt.pop %v777
          %v780 = vrsqrt.pop %v778
          %v781 = vmul.f32 %v765, %v779
          %v782 = vmul.f32 %v766, %v780
          %v784 = vlaneseq
          %v785 = vshrl.u32 %v784, 7
          %v786 = vsub.s32 0, %v785
          %v787 = vrot.slane %v755, %v786
          %v789 = vmul.f32 %v781, %v787
          %v790 = vmul.f32 %v782, %v787
          %v792 = vlaneseq
          %v793 = vshrl.u32 %v792, 7
          %v794 = vsub.s32 0, %v793
          %v795 = vrot.slane %v756, %v794
          %v797 = vadd.f32 %v789, %v795
          %v798 = vadd.f32 %v790, %v795
          %v799 = vadd.f32 %v638, %v797
          %v800 = vadd.f32 %v639, %v798
          %v801 = vpack.c.bf16 %v800, %v799
          %v803 = vunpack.c.l.b16 %v801
          %v804 = vunpack.c.h.b16 %v801
          %v805 = vpack.c.b16 %v803, %v803
          %v806 = vpack.c.b16 %v804, %v804
          %809 = vst [vmem:[#allocation2] sm:$0xf] %v805
          %810 = vst [vmem:[#allocation2 + $0x4] sm:$0xf] %v806
        $region84: #{tpu_custom_call.1} parent=63 // pred_fallthru
          _
        %v811 = vld [vmem:[#allocation2] sm:$0xf]
        %v812 = vld [vmem:[#allocation2 + $0x4] sm:$0xf]
        %v813 = vld [vmem:[#allocation9] sm:$0xff]
        %v814 = vld [vmem:[#allocation9 + $0x8] sm:$0xf]
        %v815 = vld [vmem:[#allocation9 + $0xc] sm:$0xff]
        %v816 = vld [vmem:[#allocation9 + $0x14] sm:$0xf]
        %v817 = vld [vmem:[#allocation9 + $0x18] sm:$0xff]
        %v818 = vld [vmem:[#allocation9 + $0x20] sm:$0xf]
        %v819 = vld [vmem:[#allocation9 + $0x24] sm:$0xff]
        %v820 = vld [vmem:[#allocation9 + $0x2c] sm:$0xf]
        %v821 = vld [vmem:[#allocation9 + $0x30] sm:$0xff]
        %v822 = vld [vmem:[#allocation9 + $0x38] sm:$0xf]
        %v823 = vld [vmem:[#allocation9 + $0x3c] sm:$0xff]
        %v824 = vld [vmem:[#allocation9 + $0x44] sm:$0xf]
        %v825 = vld [vmem:[#allocation9 + $0x48] sm:$0xff]
        %v826 = vld [vmem:[#allocation9 + $0x50] sm:$0xf]
        %v827 = vld [vmem:[#allocation9 + $0x54] sm:$0xff]
        %v828 = vld [vmem:[#allocation9 + $0x5c] sm:$0xf]
        %v829 = vld [vmem:[#allocation9 + $0x60] sm:$0xff]
        %v830 = vld [vmem:[#allocation9 + $0x68] sm:$0xf]
        %v831 = vld [vmem:[#allocation9 + $0x6c] sm:$0xff]
        %v832 = vld [vmem:[#allocation9 + $0x74] sm:$0xf]
        %v833 = vld [vmem:[#allocation9 + $0x78] sm:$0xff]
        %v834 = vld [vmem:[#allocation9 + $0x80] sm:$0xf]
        %v835 = vld [vmem:[#allocation9 + $0x84] sm:$0xff]
        %v836 = vld [vmem:[#allocation9 + $0x8c] sm:$0xf]
        %v837 = vld [vmem:[#allocation9 + $0x90] sm:$0xff]
        %v838 = vld [vmem:[#allocation9 + $0x98] sm:$0xf]
        %v839 = vld [vmem:[#allocation9 + $0x9c] sm:$0xff]
        %v840 = vld [vmem:[#allocation9 + $0xa4] sm:$0xf]
        %v841 = vld [vmem:[#allocation9 + $0xa8] sm:$0xff]
        %v842 = vld [vmem:[#allocation9 + $0xb0] sm:$0xf]
        %v843 = vld [vmem:[#allocation9 + $0xb4] sm:$0xff]
        %v844 = vld [vmem:[#allocation9 + $0xbc] sm:$0xf]
        %v845 = vld [vmem:[%s10] sm:$0x7]
        %v847 = vlaneseq
        %v848 = vshrl.u32 %v847, 7
        %v849 = vsub.s32 0, %v848
        %v850 = vrot.slane %v845, %v849
        %v851 = vlaneseq
        %v852 = vshrl.u32 %v851, 7
        %v853 = vsub.s32 1, %v852
        %v854 = vrot.slane %v845, %v853
        %v855 = vlaneseq
        %v856 = vshrl.u32 %v855, 7
        %v857 = vsub.s32 2, %v856
        %v858 = vrot.slane %v845, %v857
        %v864 = vunpack.c.l.b16 %v811
        %v865 = vunpack.c.l.b16 %v812
        %v866 = vpack.c.b16 %v865, %v864
        %v900 = vunpack.c.l.b16 %v813
        %v901 = vunpack.c.h.b16 %v813
        %v902 = vunpack.c.l.b16 %v814
        %v903 = vunpack.c.l.b16 %v815
        %v904 = vunpack.c.h.b16 %v815
        %v905 = vunpack.c.l.b16 %v816
        %v906 = vunpack.c.l.b16 %v817
        %v907 = vunpack.c.h.b16 %v817
        %v908 = vunpack.c.l.b16 %v818
        %v909 = vunpack.c.l.b16 %v819
        %v910 = vunpack.c.h.b16 %v819
        %v911 = vunpack.c.l.b16 %v820
        %v912 = vunpack.c.l.b16 %v821
        %v913 = vunpack.c.h.b16 %v821
        %v914 = vunpack.c.l.b16 %v822
        %v915 = vunpack.c.l.b16 %v823
        %v916 = vunpack.c.h.b16 %v823
        %v917 = vunpack.c.l.b16 %v824
        %v918 = vunpack.c.l.b16 %v825
        %v919 = vunpack.c.h.b16 %v825
        %v920 = vunpack.c.l.b16 %v826
        %v921 = vunpack.c.l.b16 %v827
        %v922 = vunpack.c.h.b16 %v827
        %v923 = vunpack.c.l.b16 %v828
        %v924 = vunpack.c.l.b16 %v829
        %v925 = vunpack.c.h.b16 %v829
        %v926 = vunpack.c.l.b16 %v830
        %v927 = vunpack.c.l.b16 %v831
        %v928 = vunpack.c.h.b16 %v831
        %v929 = vunpack.c.l.b16 %v832
        %v930 = vunpack.c.l.b16 %v833
        %v931 = vunpack.c.h.b16 %v833
        %v932 = vunpack.c.l.b16 %v834
        %v933 = vunpack.c.l.b16 %v835
        %v934 = vunpack.c.h.b16 %v835
        %v935 = vunpack.c.l.b16 %v836
        %v936 = vunpack.c.l.b16 %v837
        %v937 = vunpack.c.h.b16 %v837
        %v938 = vunpack.c.l.b16 %v838
        %v939 = vunpack.c.l.b16 %v839
        %v940 = vunpack.c.h.b16 %v839
        %v941 = vunpack.c.l.b16 %v840
        %v942 = vunpack.c.l.b16 %v841
        %v943 = vunpack.c.h.b16 %v841
        %v944 = vunpack.c.l.b16 %v842
        %v945 = vunpack.c.l.b16 %v843
        %v946 = vunpack.c.h.b16 %v843
        %v947 = vunpack.c.l.b16 %v844
        %v948 = vpack.c.b16 %v903, %v900
        %v949 = vpack.c.b16 %v904, %v901
        %v950 = vpack.c.b16 %v905, %v902
        %v951 = vpack.c.b16 %v909, %v906
        %v952 = vpack.c.b16 %v910, %v907
        %v953 = vpack.c.b16 %v911, %v908
        %v954 = vpack.c.b16 %v915, %v912
        %v955 = vpack.c.b16 %v916, %v913
        %v956 = vpack.c.b16 %v917, %v914
        %v957 = vpack.c.b16 %v921, %v918
        %v958 = vpack.c.b16 %v922, %v919
        %v959 = vpack.c.b16 %v923, %v920
        %v960 = vpack.c.b16 %v927, %v924
        %v961 = vpack.c.b16 %v928, %v925
        %v962 = vpack.c.b16 %v929, %v926
        %v963 = vpack.c.b16 %v933, %v930
        %v964 = vpack.c.b16 %v934, %v931
        %v965 = vpack.c.b16 %v935, %v932
        %v966 = vpack.c.b16 %v939, %v936
        %v967 = vpack.c.b16 %v940, %v937
        %v968 = vpack.c.b16 %v941, %v938
        %v969 = vpack.c.b16 %v945, %v942
        %v970 = vpack.c.b16 %v946, %v943
        %v971 = vpack.c.b16 %v947, %v944
        %996 = vmatprep.subr.bf16.mxu0 %v970
        %997 = vmatpush1.bf16.msra.mxu0 %v969
        %998 = vmatprep.subr.bf16.mxu0 %v967
        %999 = vmatpush1.bf16.msra.mxu0 %v966
        %1000 = vmatprep.subr.bf16.mxu0 %v964
        %1001 = vmatpush1.bf16.msra.mxu0 %v963
        %1002 = vmatprep.subr.bf16.mxu0 %v961
        %1003 = vmatpush1.bf16.msra.mxu0 %v960
        %1004 = vmatprep.subr.bf16.mxu0 %v958
        %1005 = vmatpush1.bf16.msra.mxu0 %v957
        %1006 = vmatprep.subr.bf16.mxu0 %v955
        %1007 = vmatpush1.bf16.msra.mxu0 %v954
        %1008 = vmatprep.subr.bf16.mxu0 %v952
        %1009 = vmatpush1.bf16.msra.mxu0 %v951
        %1010 = vmatprep.subr.bf16.mxu0 %v949
        %1011 = vmatpush1.bf16.msra.mxu0 %v948
        %1012 = vmatprep.subr.bf16.mxu0 0
        %1013 = vmatpush2.bf16.msra.mxu0 0
        %1014 = vmatprep.subr.bf16.mxu0 0
        %1015 = vmatpush2.bf16.msra.mxu0 0
        %1016 = vmatprep.subr.bf16.mxu0 0
        %1017 = vmatpush2.bf16.msra.mxu0 0
        %1018 = vmatprep.subr.bf16.mxu0 0
        %1019 = vmatpush2.bf16.msra.mxu0 0
        %1020 = vmatprep.subr.bf16.mxu0 0
        %1021 = vmatpush2.bf16.msra.mxu0 0
        %1022 = vmatprep.subr.bf16.mxu0 0
        %1023 = vmatpush2.bf16.msra.mxu0 0
        %1024 = vmatprep.subr.bf16.mxu0 0
        %1025 = vmatpush2.bf16.msra.mxu0 0
        %1026 = vmatprep.subr.bf16.mxu0 0
        %1027 = vmatpush2.bf16.msra.mxu0 0
        %1028 = vmatprep.mubr.bf16.mxu0 0
        %1029 = vmatmul.mubr.bf16.gmra.mxu0 %v866
        %v1030 = vpop.f32.mrf.mxu0
        %v1031 = vadd.f32 %v850, %v1030
        %v1032 = vpop.f32.mrf.mxu0
        %v1033 = vadd.f32 %v854, %v1032
        %v1034 = vpop.f32.mrf.mxu0
        %v1035 = vadd.f32 %v850, %v1034
        %v1036 = vpop.f32.mrf.mxu0
        %v1037 = vadd.f32 %v854, %v1036
        %1038 = vdwg.mxu0
        %1039 = vmatprep.subr.bf16.mxu0 0
        %1040 = vmatpush1.bf16.msra.mxu0 %v971
        %1041 = vmatprep.subr.bf16.mxu0 0
        %1042 = vmatpush1.bf16.msra.mxu0 %v968
        %1043 = vmatprep.subr.bf16.mxu0 0
        %1044 = vmatpush1.bf16.msra.mxu0 %v965
        %1045 = vmatprep.subr.bf16.mxu0 0
        %1046 = vmatpush1.bf16.msra.mxu0 %v962
        %1047 = vmatprep.subr.bf16.mxu0 0
        %1048 = vmatpush1.bf16.msra.mxu0 %v959
        %1049 = vmatprep.subr.bf16.mxu0 0
        %1050 = vmatpush1.bf16.msra.mxu0 %v956
        %1051 = vmatprep.subr.bf16.mxu0 0
        %1052 = vmatpush1.bf16.msra.mxu0 %v953
        %1053 = vmatprep.subr.bf16.mxu0 0
        %1054 = vmatpush1.bf16.msra.mxu0 %v950
        %1055 = vmatprep.subr.bf16.mxu0 0
        %1056 = vmatpush2.bf16.msra.mxu0 0
        %1057 = vmatprep.subr.bf16.mxu0 0
        %1058 = vmatpush2.bf16.msra.mxu0 0
        %1059 = vmatprep.subr.bf16.mxu0 0
        %1060 = vmatpush2.bf16.msra.mxu0 0
        %1061 = vmatprep.subr.bf16.mxu0 0
        %1062 = vmatpush2.bf16.msra.mxu0 0
        %1063 = vmatprep.subr.bf16.mxu0 0
        %1064 = vmatpush2.bf16.msra.mxu0 0
        %1065 = vmatprep.subr.bf16.mxu0 0
        %1066 = vmatpush2.bf16.msra.mxu0 0
        %1067 = vmatprep.subr.bf16.mxu0 0
        %1068 = vmatpush2.bf16.msra.mxu0 0
        %1069 = vmatprep.subr.bf16.mxu0 0
        %1070 = vmatpush2.bf16.msra.mxu0 0
        %1071 = vmatprep.mubr.bf16.mxu0 0
        %1072 = vmatmul.mubr.bf16.gmra.mxu0 %v866
        %v1073 = vpop.f32.mrf.mxu0
        %v1074 = vadd.f32 %v858, %v1073
        %v1075 = vpop.f32.mrf.mxu0
        %v1076 = vpop.f32.mrf.mxu0
        %v1077 = vadd.f32 %v858, %v1076
        %v1078 = vpop.f32.mrf.mxu0
        %1079 = vdwg.mxu0
        %v1080 = vmul.f32 %v1031, 0.5
        %v1081 = vmul.f32 %v1033, 0.5
        %v1082 = vmul.f32 %v1074, 0.5
        %v1083 = vmul.f32 %v1035, 0.5
        %v1084 = vmul.f32 %v1037, 0.5
        %v1085 = vmul.f32 %v1077, 0.5
        %v1086 = vtanh.pop %v1080
        %v1087 = vtanh.pop %v1081
        %v1088 = vtanh.pop %v1082
        %v1089 = vtanh.pop %v1083
        %v1090 = vtanh.pop %v1084
        %v1091 = vtanh.pop %v1085
        %v1092 = vmul.f32 %v1086, 0.5
        %v1093 = vmul.f32 %v1087, 0.5
        %v1094 = vmul.f32 %v1088, 0.5
        %v1095 = vmul.f32 %v1089, 0.5
        %v1096 = vmul.f32 %v1090, 0.5
        %v1097 = vmul.f32 %v1091, 0.5
        %v1098 = vadd.f32 %v1092, 0.5
        %v1099 = vadd.f32 %v1093, 0.5
        %v1100 = vadd.f32 %v1094, 0.5
        %v1101 = vadd.f32 %v1095, 0.5
        %v1102 = vadd.f32 %v1096, 0.5
        %v1103 = vadd.f32 %v1097, 0.5
        %v1104 = vpack.c.bf16 %v1101, %v1098
        %v1105 = vpack.c.bf16 %v1102, %v1099
        %v1106 = vpack.c.bf16 %v1103, %v1100
        %v1110 = vunpack.c.l.b16 %v1104
        %v1111 = vunpack.c.l.b16 %v1105
        %v1112 = vunpack.c.l.b16 %v1106
        %v1113 = vunpack.c.h.b16 %v1104
        %v1114 = vunpack.c.h.b16 %v1105
        %v1115 = vunpack.c.h.b16 %v1106
        %v1116 = vpack.c.b16 %v1111, %v1110
        %v1117 = vpack.c.b16 %v1112, %v1112
        %v1118 = vpack.c.b16 %v1114, %v1113
        %v1119 = vpack.c.b16 %v1115, %v1115
        %1124 = vst [vmem:[%s462] sm:$0xff] %v1116
        %1125 = vst [vmem:[%s462 + $0x8] sm:$0xf] %v1117
        %1126 = vst [vmem:[%s462 + $0xc] sm:$0xff] %v1118
        %1127 = vst [vmem:[%s462 + $0x14] sm:$0xf] %v1119
        %s1128 = sand.u32 %s288, 1
        %s1129 = scalar_lea.sflag [#allocation5], %s1128
        %s1130 = sand.u32 %s288, 1
        %s1131 = smul.addr %s1130, 24
        %s1132 = scalar_lea.vmem [#allocation11], %s1131
        // Predicated region
        $region85: #{tpu_custom_call.1} parent=63 // pred_check
          %p1133 = pneg %p298
        $region86: #{tpu_custom_call.1} parent=63 // pred_check_branch
          %1135 = sbr.rel (%p1133) target = $region88
        $region87: #{tpu_custom_call.1} parent=63 // pred_region
          %s1136 = smul.u32 2, %s34
          %s1137 = smul.u32 3, %s35
          %s1139 = ssub.s32 384, 384
          %1140 = vsyncadd %s1129, %s1139
          %s1141 = smul.addr %s1136, 3
          %s1142 = sadd.s32 %s1137, %s1141
          %s1143 = smul.addr %s1142, 64
          %s1144 = scalar_lea.hbm %s11, %s1143
          %s1145 = sshll.u32 %s1132, 4
          %s1146 = int_to_ptr.vmem [resolvable:$true] %s1145
          %1151 = dma.vmem_to_hbm [thread:$0]  %s1146, 384, %s1144, %s1129, 192, 192, 12
        $region88: #{tpu_custom_call.1} parent=63 // pred_fallthru
          _
      $region64: #{tpu_custom_call.1} parent=5 // pred_fallthru
        _
      %p1152 = scmp.le.s32.totalorder 2, %s25
      // Predicated region
      $region89: #{tpu_custom_call.1} parent=5 // pred_check
        %p1153 = pneg %p1152
      $region90: #{tpu_custom_call.1} parent=5 // pred_check_branch
        %1155 = sbr.rel (%p1153) target = $region92
      $region91: #{tpu_custom_call.1} parent=5 // pred_region
        %s1156 = ssub.s32 %s25, 2
        // Predicated region
        $region93: #{tpu_custom_call.1} parent=91 // pred_check
          %p1157 = pneg %p304
        $region94: #{tpu_custom_call.1} parent=91 // pred_check_branch
          %1159 = sbr.rel (%p1157) target = $region96
        $region95: #{tpu_custom_call.1} parent=91 // pred_region
          %s1160 = sand.u32 %s289, 1
          %s1161 = scalar_lea.sflag [#allocation5], %s1160
          %s1162 = sand.u32 %s289, 1
          %s1163 = smul.addr %s1162, 24
          %s1164 = scalar_lea.vmem [#allocation11], %s1163
          %1165 = dma.done %s1161, 384
        $region96: #{tpu_custom_call.1} parent=91 // pred_fallthru
          _
      $region92: #{tpu_custom_call.1} parent=5 // pred_fallthru
        _
    $region6: #{tpu_custom_call.1} parent=1 // loop_footer
      %s29 = sadd.s32 1, %s25
    $region7: #{tpu_custom_call.1} parent=1 // loop_footer_branch
      %24 = sbr.rel target = $region3
    $region8: #{tpu_custom_call.1} parent=1 // loop_exit
      _
    %1166 = vsyncpa [#allocation4], 1
    %s1167 = scalar_lea.sflag [#allocation4], 1
    %1168 = vsyncpa %s1167, 1
    %1169 = vsyncpa [#allocation7], 1
    %1170 = vsyncpa [#allocation10], 1
    %1171 = vsyncpa [#allocation5], 1
    %s1172 = scalar_lea.sflag [#allocation5], 1
    %1173 = vsyncpa %s1172, 1

</llo_original>
